<compile_context>
chip_gen: v7x
topology: tpu7x:2x2x1
jax: 0.10.0
libtpu: 0.0.40
codegen_flags: <defaults>
</compile_context>

<pallas_src>
import jax
import jax.numpy as jnp
from jax.experimental import pallas as pl
from jax.experimental.pallas import tpu as pltpu


def film_kernel(x_ref, y_ref, w1_ref, b1_ref, w2_ref, b2_ref, wf_ref, bf_ref,
                o_ref):
    # Per-step shapes (batch dim squeezed out by the BlockSpecs):
    #   x_ref : (C_in, HWp)  bf16     y_ref : (1, F)      f32
    #   w1_ref: (IMM, C_in)  bf16     b1_ref: (IMM, 1)    f32
    #   w2_ref: (64, IMM)    bf16     b2_ref: (64, 1)     f32
    #   wf_ref: (128, F)     f32  (rows [0:64] scale, [64:128] shift)
    #   bf_ref: (128, 1)     f32
    #   o_ref : (64, HWp)    f32
    c_out = o_ref.shape[0]

    def conv1x1(w_ref, xin):
        k = w_ref.shape[1]
        if k <= 16:
            # Tiny K: unrolled VPU multiply-accumulate (outer product per
            # input channel).  MXU would pad K to 128/256 -> <6% utilization.
            # Elementwise math kept in f32 (v5e has no bf16 VPU).
            w = w_ref[...].astype(jnp.float32)              # (out, K)
            xf = xin.astype(jnp.float32)                    # (K, HWp)
            acc = w[:, 0:1] * xf[0:1, :]                    # (out, HWp)
            for c in range(1, k):
                acc = acc + w[:, c:c + 1] * xf[c:c + 1, :]
            return acc
        # Realistic channel counts: bf16 MXU matmul with f32 accumulation.
        return jnp.dot(w_ref[...], xin.astype(w_ref.dtype),
                       preferred_element_type=jnp.float32)

    # conv1 (1x1) + bias + ReLU : (IMM, C_in) @ (C_in, HWp)
    h = conv1x1(w1_ref, x_ref[...])
    h = jnp.maximum(h + b1_ref[...], 0.0)                   # (IMM, HWp) f32

    # conv2 (1x1) + bias + ReLU : (64, IMM) @ (IMM, HWp)
    f = conv1x1(w2_ref, h)
    f = jnp.maximum(f + b2_ref[...], 0.0)                   # (64, HWp) f32

    # Fused FiLM scale|shift projection, directly in channel-on-sublane
    # layout: ss[o] = sum_f wf[o, f] * y[f] + bf[o].  F is tiny, so a VPU
    # multiply + XLU lane-reduce beats a padded matvec.
    prod = wf_ref[...] * y_ref[...]                          # (128, F)
    ss = jnp.sum(prod, axis=-1, keepdims=True) + bf_ref[...]  # (128, 1)
    scale = ss[:c_out, :]                                    # (64, 1)
    shift = ss[c_out:, :]                                    # (64, 1)

    # Lane-broadcast the per-channel scale/shift over all pixels.
    o_ref[...] = f * scale + shift                           # (64, HWp) f32


def prepare_params(params):
    """One-time parameter prep (fused FiLM concat, bf16 casts, reshapes)."""
    (w1, b1, w2, b2, ww, bw, wb, bb) = params                # torch layouts
    imm = w1.shape[0]
    c_out = w2.shape[0]                                      # 64
    w1b = w1.astype(jnp.bfloat16)                            # (IMM, C_in)
    w2b = w2.astype(jnp.bfloat16)                            # (64, IMM)
    b1r = b1.reshape(imm, 1).astype(jnp.float32)
    b2r = b2.reshape(c_out, 1).astype(jnp.float32)
    wf = jnp.concatenate([ww, wb], axis=0).astype(jnp.float32)          # (128, F)
    bf = jnp.concatenate([bw, bb], axis=0).reshape(2 * c_out, 1).astype(jnp.float32)
    return (w1b, b1r, w2b, b2r, wf, bf)


def agent_controller_film(x_nchw, y, prepared):
    """x_nchw: (N, C_in, H, W) f32; y: (N, F) f32 -> (N, 64, H, W) f32."""
    (w1b, b1r, w2b, b2r, wf, bf) = prepared
    N, C_in, H, W = x_nchw.shape
    F_in = y.shape[1]
    imm = w1b.shape[0]
    C_out = w2b.shape[0]                                     # 64
    HW = H * W
    HWp = ((HW + 127) // 128) * 128                          # lane-dense stores

    # Free reshape NCHW -> (N, C_in, HW); bf16 halves input HBM bytes.
    x3 = x_nchw.reshape(N, C_in, HW).astype(jnp.bfloat16)
    if HWp != HW:
        # 1x1 convs are per-pixel, so zero-padded pixels are sliced off below.
        x3 = jnp.pad(x3, ((0, 0), (0, 0), (0, HWp - HW)))
    y3 = y.reshape(N, 1, F_in).astype(jnp.float32)

    out = pl.pallas_call(
        film_kernel,
        out_shape=jax.ShapeDtypeStruct((N, C_out, HWp), jnp.float32),
        grid=(N,),                                           # one image / step
        in_specs=[
            pl.BlockSpec((None, C_in, HWp), lambda n: (n, 0, 0)),   # x  (pipelined)
            pl.BlockSpec((None, 1, F_in), lambda n: (n, 0, 0)),     # y  (pipelined)
            pl.BlockSpec((imm, C_in), lambda n: (0, 0)),            # conv1 W (resident)
            pl.BlockSpec((imm, 1), lambda n: (0, 0)),               # conv1 b
            pl.BlockSpec((C_out, imm), lambda n: (0, 0)),           # conv2 W
            pl.BlockSpec((C_out, 1), lambda n: (0, 0)),             # conv2 b
            pl.BlockSpec((2 * C_out, F_in), lambda n: (0, 0)),      # fused FiLM W
            pl.BlockSpec((2 * C_out, 1), lambda n: (0, 0)),         # fused FiLM b
        ],
        out_specs=pl.BlockSpec((None, C_out, HWp), lambda n: (n, 0, 0)),
        compiler_params=pltpu.CompilerParams(
            dimension_semantics=("parallel",),               # megacore on v7x
            vmem_limit_bytes=32 * 1024 * 1024),
    )(x3, y3, w1b, b1r, w2b, b2r, wf, bf)

    if HWp != HW:
        out = out[:, :, :HW]
    return out.reshape(N, C_out, H, W)                       # free reshape


def init_params(key, in_features, out_features, in_channels, imm_channels):
    """Deterministic parameters in PyTorch layouts.

    Linear layers follow initialize_parameters: weight ~ N(0,1) row-wise
    L2-normalized over in_features, bias = 0.  Conv 1x1 layers (untouched by
    initialize_parameters) get small deterministic normals."""
    assert out_features == 64, "FiLM output must match the 64-channel conv output"
    k1, k2, k3, k4, k5, k6 = jax.random.split(key, 6)

    # conv weights in torch layout (out_ch, in_ch) -- 1x1 kernel squeezed.
    w1 = 0.1 * jax.random.normal(k1, (imm_channels, in_channels), jnp.float32)
    b1 = 0.05 * jax.random.normal(k5, (imm_channels,), jnp.float32)
    w2 = 0.1 * jax.random.normal(k2, (64, imm_channels), jnp.float32)
    b2 = 0.05 * jax.random.normal(k6, (64,), jnp.float32)

    def norm_linear(k, fin, fout):
        w = jax.random.normal(k, (fout, fin), jnp.float32)    # torch (out, in)
        w = w / jnp.sqrt(jnp.sum(w * w, axis=1, keepdims=True))
        return w, jnp.zeros((fout,), jnp.float32)

    ww, bw = norm_linear(k3, in_features, out_features)
    wb, bb = norm_linear(k4, in_features, out_features)
    return (w1, b1, w2, b2, ww, bw, wb, bb)


def reference_forward(x_nchw, y, params):
    """Pure-JAX (f32) mirror of the PyTorch module forward (NCHW)."""
    (w1, b1, w2, b2, ww, bw, wb, bb) = params
    h = jnp.einsum('nchw,ic->nihw', x_nchw, w1) + b1[None, :, None, None]
    h = jnp.maximum(h, 0.0)
    f = jnp.einsum('nihw,oi->nohw', h, w2) + b2[None, :, None, None]
    f = jnp.maximum(f, 0.0)
    scale = y @ ww.T + bw
    shift = y @ wb.T + bb
    return f * scale[:, :, None, None] + shift[:, :, None, None]


if __name__ == "__main__":
    # Small shapes consistent with the module (H*W = 256 -> lane-dense output).
    N, C_in, H, W = 2, 4, 16, 16
    in_features, out_features, imm_channels = 16, 64, 8

    key = jax.random.PRNGKey(0)
    kx, ky, kp = jax.random.split(key, 3)
    x = jax.random.normal(kx, (N, C_in, H, W), jnp.float32)
    y = jax.random.normal(ky, (N, in_features), jnp.float32)

    params = init_params(kp, in_features, out_features, C_in, imm_channels)
    prepared = prepare_params(params)

    film_fn = jax.jit(agent_controller_film)
    out = jax.block_until_ready(film_fn(x, y, prepared))

    ref = reference_forward(x, y, params)
    assert out.shape == (N, 64, H, W)
    # Tolerance loosened vs the all-f32 version: x / conv weights are bf16.
    assert jnp.allclose(out, ref, atol=2e-2, rtol=2e-2), "mismatch vs reference"

    print("KERNEL_OK")
</pallas_src>

<mosaic_0001>
module attributes {stable_mosaic.version = 11 : i64} {
  func.func @film_kernel(%arg0: i32, %arg1: memref<1x4x256xbf16, #tpu.memory_space<vmem>>, %arg2: memref<1x1x16xf32, #tpu.memory_space<vmem>>, %arg3: memref<8x4xbf16, #tpu.memory_space<vmem>>, %arg4: memref<8x1xf32, #tpu.memory_space<vmem>>, %arg5: memref<64x8xbf16, #tpu.memory_space<vmem>>, %arg6: memref<64x1xf32, #tpu.memory_space<vmem>>, %arg7: memref<128x16xf32, #tpu.memory_space<vmem>>, %arg8: memref<128x1xf32, #tpu.memory_space<vmem>>, %arg9: memref<1x64x256xf32, #tpu.memory_space<vmem>>) attributes {dimension_semantics = [#tpu.dimension_semantics<parallel>], iteration_bounds = array<i64: 2>, scalar_prefetch = 0 : i64, scratch_operands = 0 : i64, tpu.core_type = #tpu.core_type<tc>, window_params = [{transform_indices = @transform_0, window_bounds = array<i64: 1, 4, 256>}, {transform_indices = @transform_1, window_bounds = array<i64: 1, 1, 16>}, {pipeline_mode = #tpu.pipeline_mode<synchronous>, transform_indices = @transform_2, window_bounds = array<i64: 8, 4>}, {pipeline_mode = #tpu.pipeline_mode<synchronous>, transform_indices = @transform_3, window_bounds = array<i64: 8, 1>}, {pipeline_mode = #tpu.pipeline_mode<synchronous>, transform_indices = @transform_4, window_bounds = array<i64: 64, 8>}, {pipeline_mode = #tpu.pipeline_mode<synchronous>, transform_indices = @transform_5, window_bounds = array<i64: 64, 1>}, {pipeline_mode = #tpu.pipeline_mode<synchronous>, transform_indices = @transform_6, window_bounds = array<i64: 128, 16>}, {pipeline_mode = #tpu.pipeline_mode<synchronous>, transform_indices = @transform_7, window_bounds = array<i64: 128, 1>}, {transform_indices = @transform_8, window_bounds = array<i64: 1, 64, 256>}]} {
    %c0 = arith.constant 0 : index
    %c0_0 = arith.constant 0 : index
    %c0_1 = arith.constant 0 : index
    %0 = vector.load %arg1[%c0, %c0_0, %c0_1] : memref<1x4x256xbf16, #tpu.memory_space<vmem>>, vector<1x4x256xbf16>
    %1 = vector.shape_cast %0 : vector<1x4x256xbf16> to vector<4x256xbf16>
    %c0_2 = arith.constant 0 : index
    %c0_3 = arith.constant 0 : index
    %2 = vector.load %arg3[%c0_2, %c0_3] : memref<8x4xbf16, #tpu.memory_space<vmem>>, vector<8x4xbf16>
    %3 = arith.extf %2 : vector<8x4xbf16> to vector<8x4xf32>
    %4 = arith.extf %1 : vector<4x256xbf16> to vector<4x256xf32>
    %5 = vector.extract_strided_slice %3 {offsets = [0, 0], sizes = [8, 1], strides = [1, 1]} : vector<8x4xf32> to vector<8x1xf32>
    %6 = vector.extract_strided_slice %4 {offsets = [0, 0], sizes = [1, 256], strides = [1, 1]} : vector<4x256xf32> to vector<1x256xf32>
    %7 = vector.broadcast %5 : vector<8x1xf32> to vector<8x256xf32>
    %8 = vector.broadcast %6 : vector<1x256xf32> to vector<8x256xf32>
    %9 = arith.mulf %7, %8 : vector<8x256xf32>
    %10 = vector.extract_strided_slice %3 {offsets = [0, 1], sizes = [8, 1], strides = [1, 1]} : vector<8x4xf32> to vector<8x1xf32>
    %11 = vector.extract_strided_slice %4 {offsets = [1, 0], sizes = [1, 256], strides = [1, 1]} : vector<4x256xf32> to vector<1x256xf32>
    %12 = vector.broadcast %10 : vector<8x1xf32> to vector<8x256xf32>
    %13 = vector.broadcast %11 : vector<1x256xf32> to vector<8x256xf32>
    %14 = arith.mulf %12, %13 : vector<8x256xf32>
    %15 = arith.addf %9, %14 : vector<8x256xf32>
    %16 = vector.extract_strided_slice %3 {offsets = [0, 2], sizes = [8, 1], strides = [1, 1]} : vector<8x4xf32> to vector<8x1xf32>
    %17 = vector.extract_strided_slice %4 {offsets = [2, 0], sizes = [1, 256], strides = [1, 1]} : vector<4x256xf32> to vector<1x256xf32>
    %18 = vector.broadcast %16 : vector<8x1xf32> to vector<8x256xf32>
    %19 = vector.broadcast %17 : vector<1x256xf32> to vector<8x256xf32>
    %20 = arith.mulf %18, %19 : vector<8x256xf32>
    %21 = arith.addf %15, %20 : vector<8x256xf32>
    %22 = vector.extract_strided_slice %3 {offsets = [0, 3], sizes = [8, 1], strides = [1, 1]} : vector<8x4xf32> to vector<8x1xf32>
    %23 = vector.extract_strided_slice %4 {offsets = [3, 0], sizes = [1, 256], strides = [1, 1]} : vector<4x256xf32> to vector<1x256xf32>
    %24 = vector.broadcast %22 : vector<8x1xf32> to vector<8x256xf32>
    %25 = vector.broadcast %23 : vector<1x256xf32> to vector<8x256xf32>
    %26 = arith.mulf %24, %25 : vector<8x256xf32>
    %27 = arith.addf %21, %26 : vector<8x256xf32>
    %c0_4 = arith.constant 0 : index
    %c0_5 = arith.constant 0 : index
    %28 = vector.load %arg4[%c0_4, %c0_5] : memref<8x1xf32, #tpu.memory_space<vmem>>, vector<8x1xf32>
    %29 = vector.broadcast %28 : vector<8x1xf32> to vector<8x256xf32>
    %30 = arith.addf %27, %29 : vector<8x256xf32>
    %cst = arith.constant 0.000000e+00 : f32
    %31 = vector.broadcast %cst : f32 to vector<8x256xf32>
    %32 = arith.maximumf %30, %31 : vector<8x256xf32>
    %c0_6 = arith.constant 0 : index
    %c0_7 = arith.constant 0 : index
    %33 = vector.load %arg5[%c0_6, %c0_7] : memref<64x8xbf16, #tpu.memory_space<vmem>>, vector<64x8xbf16>
    %34 = arith.extf %33 : vector<64x8xbf16> to vector<64x8xf32>
    %35 = vector.extract_strided_slice %34 {offsets = [0, 0], sizes = [64, 1], strides = [1, 1]} : vector<64x8xf32> to vector<64x1xf32>
    %36 = vector.extract_strided_slice %32 {offsets = [0, 0], sizes = [1, 256], strides = [1, 1]} : vector<8x256xf32> to vector<1x256xf32>
    %37 = vector.broadcast %35 : vector<64x1xf32> to vector<64x256xf32>
    %38 = vector.broadcast %36 : vector<1x256xf32> to vector<64x256xf32>
    %39 = arith.mulf %37, %38 : vector<64x256xf32>
    %40 = vector.extract_strided_slice %34 {offsets = [0, 1], sizes = [64, 1], strides = [1, 1]} : vector<64x8xf32> to vector<64x1xf32>
    %41 = vector.extract_strided_slice %32 {offsets = [1, 0], sizes = [1, 256], strides = [1, 1]} : vector<8x256xf32> to vector<1x256xf32>
    %42 = vector.broadcast %40 : vector<64x1xf32> to vector<64x256xf32>
    %43 = vector.broadcast %41 : vector<1x256xf32> to vector<64x256xf32>
    %44 = arith.mulf %42, %43 : vector<64x256xf32>
    %45 = arith.addf %39, %44 : vector<64x256xf32>
    %46 = vector.extract_strided_slice %34 {offsets = [0, 2], sizes = [64, 1], strides = [1, 1]} : vector<64x8xf32> to vector<64x1xf32>
    %47 = vector.extract_strided_slice %32 {offsets = [2, 0], sizes = [1, 256], strides = [1, 1]} : vector<8x256xf32> to vector<1x256xf32>
    %48 = vector.broadcast %46 : vector<64x1xf32> to vector<64x256xf32>
    %49 = vector.broadcast %47 : vector<1x256xf32> to vector<64x256xf32>
    %50 = arith.mulf %48, %49 : vector<64x256xf32>
    %51 = arith.addf %45, %50 : vector<64x256xf32>
    %52 = vector.extract_strided_slice %34 {offsets = [0, 3], sizes = [64, 1], strides = [1, 1]} : vector<64x8xf32> to vector<64x1xf32>
    %53 = vector.extract_strided_slice %32 {offsets = [3, 0], sizes = [1, 256], strides = [1, 1]} : vector<8x256xf32> to vector<1x256xf32>
    %54 = vector.broadcast %52 : vector<64x1xf32> to vector<64x256xf32>
    %55 = vector.broadcast %53 : vector<1x256xf32> to vector<64x256xf32>
    %56 = arith.mulf %54, %55 : vector<64x256xf32>
    %57 = arith.addf %51, %56 : vector<64x256xf32>
    %58 = vector.extract_strided_slice %34 {offsets = [0, 4], sizes = [64, 1], strides = [1, 1]} : vector<64x8xf32> to vector<64x1xf32>
    %59 = vector.extract_strided_slice %32 {offsets = [4, 0], sizes = [1, 256], strides = [1, 1]} : vector<8x256xf32> to vector<1x256xf32>
    %60 = vector.broadcast %58 : vector<64x1xf32> to vector<64x256xf32>
    %61 = vector.broadcast %59 : vector<1x256xf32> to vector<64x256xf32>
    %62 = arith.mulf %60, %61 : vector<64x256xf32>
    %63 = arith.addf %57, %62 : vector<64x256xf32>
    %64 = vector.extract_strided_slice %34 {offsets = [0, 5], sizes = [64, 1], strides = [1, 1]} : vector<64x8xf32> to vector<64x1xf32>
    %65 = vector.extract_strided_slice %32 {offsets = [5, 0], sizes = [1, 256], strides = [1, 1]} : vector<8x256xf32> to vector<1x256xf32>
    %66 = vector.broadcast %64 : vector<64x1xf32> to vector<64x256xf32>
    %67 = vector.broadcast %65 : vector<1x256xf32> to vector<64x256xf32>
    %68 = arith.mulf %66, %67 : vector<64x256xf32>
    %69 = arith.addf %63, %68 : vector<64x256xf32>
    %70 = vector.extract_strided_slice %34 {offsets = [0, 6], sizes = [64, 1], strides = [1, 1]} : vector<64x8xf32> to vector<64x1xf32>
    %71 = vector.extract_strided_slice %32 {offsets = [6, 0], sizes = [1, 256], strides = [1, 1]} : vector<8x256xf32> to vector<1x256xf32>
    %72 = vector.broadcast %70 : vector<64x1xf32> to vector<64x256xf32>
    %73 = vector.broadcast %71 : vector<1x256xf32> to vector<64x256xf32>
    %74 = arith.mulf %72, %73 : vector<64x256xf32>
    %75 = arith.addf %69, %74 : vector<64x256xf32>
    %76 = vector.extract_strided_slice %34 {offsets = [0, 7], sizes = [64, 1], strides = [1, 1]} : vector<64x8xf32> to vector<64x1xf32>
    %77 = vector.extract_strided_slice %32 {offsets = [7, 0], sizes = [1, 256], strides = [1, 1]} : vector<8x256xf32> to vector<1x256xf32>
    %78 = vector.broadcast %76 : vector<64x1xf32> to vector<64x256xf32>
    %79 = vector.broadcast %77 : vector<1x256xf32> to vector<64x256xf32>
    %80 = arith.mulf %78, %79 : vector<64x256xf32>
    %81 = arith.addf %75, %80 : vector<64x256xf32>
    %c0_8 = arith.constant 0 : index
    %c0_9 = arith.constant 0 : index
    %82 = vector.load %arg6[%c0_8, %c0_9] : memref<64x1xf32, #tpu.memory_space<vmem>>, vector<64x1xf32>
    %83 = vector.broadcast %82 : vector<64x1xf32> to vector<64x256xf32>
    %84 = arith.addf %81, %83 : vector<64x256xf32>
    %cst_10 = arith.constant 0.000000e+00 : f32
    %85 = vector.broadcast %cst_10 : f32 to vector<64x256xf32>
    %86 = arith.maximumf %84, %85 : vector<64x256xf32>
    %c0_11 = arith.constant 0 : index
    %c0_12 = arith.constant 0 : index
    %87 = vector.load %arg7[%c0_11, %c0_12] : memref<128x16xf32, #tpu.memory_space<vmem>>, vector<128x16xf32>
    %c0_13 = arith.constant 0 : index
    %c0_14 = arith.constant 0 : index
    %c0_15 = arith.constant 0 : index
    %88 = vector.load %arg2[%c0_13, %c0_14, %c0_15] : memref<1x1x16xf32, #tpu.memory_space<vmem>>, vector<1x1x16xf32>
    %89 = vector.shape_cast %88 : vector<1x1x16xf32> to vector<1x16xf32>
    %90 = vector.broadcast %89 : vector<1x16xf32> to vector<128x16xf32>
    %91 = arith.mulf %87, %90 : vector<128x16xf32>
    %cst_16 = arith.constant dense<0.000000e+00> : vector<128xf32>
    %92 = vector.multi_reduction <add>, %91, %cst_16 [1] : vector<128x16xf32> to vector<128xf32>
    %93 = vector.shape_cast %92 : vector<128xf32> to vector<128x1xf32>
    %c0_17 = arith.constant 0 : index
    %c0_18 = arith.constant 0 : index
    %94 = vector.load %arg8[%c0_17, %c0_18] : memref<128x1xf32, #tpu.memory_space<vmem>>, vector<128x1xf32>
    %95 = arith.addf %93, %94 : vector<128x1xf32>
    %96 = vector.extract_strided_slice %95 {offsets = [0, 0], sizes = [64, 1], strides = [1, 1]} : vector<128x1xf32> to vector<64x1xf32>
    %97 = vector.extract_strided_slice %95 {offsets = [64, 0], sizes = [64, 1], strides = [1, 1]} : vector<128x1xf32> to vector<64x1xf32>
    %98 = vector.broadcast %96 : vector<64x1xf32> to vector<64x256xf32>
    %99 = arith.mulf %86, %98 : vector<64x256xf32>
    %100 = vector.broadcast %97 : vector<64x1xf32> to vector<64x256xf32>
    %101 = arith.addf %99, %100 : vector<64x256xf32>
    %c0_19 = arith.constant 0 : index
    %c0_20 = arith.constant 0 : index
    %c0_21 = arith.constant 0 : index
    %102 = vector.load %arg9[%c0_19, %c0_20, %c0_21] : memref<1x64x256xf32, #tpu.memory_space<vmem>>, vector<1x64x256xf32>
    %103 = vector.shape_cast %102 : vector<1x64x256xf32> to vector<64x256xf32>
    %104 = vector.shape_cast %101 : vector<64x256xf32> to vector<1x64x256xf32>
    tpu.vector_store %arg9[%c0_19, %c0_20, %c0_21], %104 {strides = array<i32>} : memref<1x64x256xf32, #tpu.memory_space<vmem>>, vector<1x64x256xf32>,
    return
  }
  func.func @transform_0(%arg0: i32) -> (i32, i32, i32) {
    %c0_i32 = arith.constant 0 : i32
    %c0_i32_0 = arith.constant 0 : i32
    %c0_i32_1 = arith.constant 0 : i32
    return %arg0, %c0_i32, %c0_i32_0 : i32, i32, i32
  }
  func.func @transform_1(%arg0: i32) -> (i32, i32, i32) {
    %c0_i32 = arith.constant 0 : i32
    %c0_i32_0 = arith.constant 0 : i32
    %c0_i32_1 = arith.constant 0 : i32
    return %arg0, %c0_i32, %c0_i32_0 : i32, i32, i32
  }
  func.func @transform_2(%arg0: i32) -> (i32, i32) {
    %c0_i32 = arith.constant 0 : i32
    %c0_i32_0 = arith.constant 0 : i32
    %c0_i32_1 = arith.constant 0 : i32
    return %c0_i32, %c0_i32_0 : i32, i32
  }
  func.func @transform_3(%arg0: i32) -> (i32, i32) {
    %c0_i32 = arith.constant 0 : i32
    %c0_i32_0 = arith.constant 0 : i32
    %c0_i32_1 = arith.constant 0 : i32
    return %c0_i32, %c0_i32_0 : i32, i32
  }
  func.func @transform_4(%arg0: i32) -> (i32, i32) {
    %c0_i32 = arith.constant 0 : i32
    %c0_i32_0 = arith.constant 0 : i32
    %c0_i32_1 = arith.constant 0 : i32
    return %c0_i32, %c0_i32_0 : i32, i32
  }
  func.func @transform_5(%arg0: i32) -> (i32, i32) {
    %c0_i32 = arith.constant 0 : i32
    %c0_i32_0 = arith.constant 0 : i32
    %c0_i32_1 = arith.constant 0 : i32
    return %c0_i32, %c0_i32_0 : i32, i32
  }
  func.func @transform_6(%arg0: i32) -> (i32, i32) {
    %c0_i32 = arith.constant 0 : i32
    %c0_i32_0 = arith.constant 0 : i32
    %c0_i32_1 = arith.constant 0 : i32
    return %c0_i32, %c0_i32_0 : i32, i32
  }
  func.func @transform_7(%arg0: i32) -> (i32, i32) {
    %c0_i32 = arith.constant 0 : i32
    %c0_i32_0 = arith.constant 0 : i32
    %c0_i32_1 = arith.constant 0 : i32
    return %c0_i32, %c0_i32_0 : i32, i32
  }
  func.func @transform_8(%arg0: i32) -> (i32, i32, i32) {
    %c0_i32 = arith.constant 0 : i32
    %c0_i32_0 = arith.constant 0 : i32
    %c0_i32_1 = arith.constant 0 : i32
    return %arg0, %c0_i32, %c0_i32_0 : i32, i32, i32
  }
}

</mosaic_0001>

<llo_original>
// kernel: agent_controller_film.1
$region0: #{agent_controller_film.1}
  #allocation0 [shape = 'u32[]', space=smem, size = 0x4, offset = 0x4, fixed_abs, tag = 'smem constant byte address 0x4 - core index']
  #allocation1 [shape = 'u32[144,128]{1,0:T(1,128)}', space=vmem, size = 0x12000, scoped, tag = 'internal scratch']
  %s0 = inlined_call_operand.vmem [shape: bf16[2,4,256], index: 0, kind: input, shape index: {}]
  %s1 = inlined_call_operand.vmem [shape: f32[2,1,16], index: 1, kind: input, shape index: {}]
  %s2 = inlined_call_operand.vmem [shape: bf16[8,4], index: 2, kind: input, shape index: {}]
  %s3 = inlined_call_operand.vmem [shape: f32[8,1], index: 3, kind: input, shape index: {}]
  %s4 = inlined_call_operand.vmem [shape: bf16[64,8], index: 4, kind: input, shape index: {}]
  %s5 = inlined_call_operand.vmem [shape: f32[64,1], index: 5, kind: input, shape index: {}]
  %s6 = inlined_call_operand.vmem [shape: f32[128,16], index: 6, kind: input, shape index: {}]
  %s7 = inlined_call_operand.vmem [shape: f32[128,1], index: 7, kind: input, shape index: {}]
  %s8 = inlined_call_operand.vmem [shape: f32[2,64,256], index: 8, kind: output, shape index: {}]
  %s9 = sld [smem:[#allocation0]]
  $region65: #{agent_controller_film.1} parent=0
    _
  %s11 = ssub.s32 1, %s9
  %s12 = scalar_select 0, %s11, %s9
  loop: start=0, step=1, limit=4
  $region2: #{agent_controller_film.1} parent=0 // loop_pre_header
    _
  $region3: #{agent_controller_film.1} parent=0 // loop_header
    %s14 = sphi 0, %s18
    %p15 = scmp.ge.s32.totalorder %s14, 4
    %s24 = sphi 0, %s26
    %s27 = sphi 0, %s24
    %s28 = sphi 0, %s27
    %s44 = sphi 0, %s28
    %s50 = sphi 0, %s52
    %s53 = sphi 0, %s50
    %s54 = sphi 0, %s53
    %s70 = sphi 0, %s54
    %s74 = sphi 0, %s74
    %s76 = sphi 0, %s74
    %s77 = sphi 0, %s76
    %s91 = sphi 0, %s77
    %s95 = sphi 0, %s95
    %s97 = sphi 0, %s95
    %s98 = sphi 0, %s97
    %s112 = sphi 0, %s98
    %s116 = sphi 0, %s116
    %s118 = sphi 0, %s116
    %s119 = sphi 0, %s118
    %s133 = sphi 0, %s119
    %s137 = sphi 0, %s137
    %s139 = sphi 0, %s137
    %s140 = sphi 0, %s139
    %s154 = sphi 0, %s140
    %s158 = sphi 0, %s158
    %s160 = sphi 0, %s158
    %s161 = sphi 0, %s160
    %s175 = sphi 0, %s161
    %s179 = sphi 0, %s179
    %s181 = sphi 0, %s179
    %s182 = sphi 0, %s181
    %s196 = sphi 0, %s182
    %s202 = sphi 0, %s204
    %s205 = sphi 0, %s202
    %s206 = sphi 0, %s205
    %s222 = sphi 0, %s206
  $region4: #{agent_controller_film.1} parent=0 // loop_header_branch
    %17 = sbr.rel (%p15) target = $region8
  $region5: #{agent_controller_film.1} parent=0 // loop_body
    %s19 = ssub.s32 %s14, 1
    %s20 = ssub.s32 %s14, 2
    %s21 = sadd.s32 %s14, 1
    %s22 = ssub.s32 %s14, %s21
    %p23 = scmp.eq.s32.totalorder %s22, 0
    %s25 = sadd.s32 %s24, 1
    %s26 = scalar_select %p23, %s24, %s25
    %p29 = pneg %p23
    %p30 = scmp.eq.s32.totalorder %s14, 1
    %p31 = por %p29, %p30
    %p32 = scmp.ne.s32.totalorder %s24, %s27
    %p33 = scmp.eq.s32.totalorder %s14, 0
    %p34 = por %p32, %p33
    %p35 = scmp.ne.s32.totalorder %s24, %s27
    %p36 = scmp.eq.s32.totalorder %s19, 1
    %p37 = por %p35, %p36
    %p38 = scmp.ne.s32.totalorder %s27, %s28
    %p39 = scmp.eq.s32.totalorder %s19, 0
    %p40 = por %p38, %p39
    %p41 = scmp.ne.s32.totalorder %s27, %s28
    %p42 = scmp.eq.s32.totalorder %s20, 1
    %p43 = por %p41, %p42
    %p45 = scmp.ne.s32.totalorder %s28, %s44
    %p46 = scmp.eq.s32.totalorder %s20, 0
    %p47 = por %p45, %p46
    %s48 = ssub.s32 %s14, %s21
    %p49 = scmp.eq.s32.totalorder %s48, 0
    %s51 = sadd.s32 %s50, 1
    %s52 = scalar_select %p49, %s50, %s51
    %p55 = pneg %p49
    %p56 = scmp.eq.s32.totalorder %s14, 1
    %p57 = por %p55, %p56
    %p58 = scmp.ne.s32.totalorder %s50, %s53
    %p59 = scmp.eq.s32.totalorder %s14, 0
    %p60 = por %p58, %p59
    %p61 = scmp.ne.s32.totalorder %s50, %s53
    %p62 = scmp.eq.s32.totalorder %s19, 1
    %p63 = por %p61, %p62
    %p64 = scmp.ne.s32.totalorder %s53, %s54
    %p65 = scmp.eq.s32.totalorder %s19, 0
    %p66 = por %p64, %p65
    %p67 = scmp.ne.s32.totalorder %s53, %s54
    %p68 = scmp.eq.s32.totalorder %s20, 1
    %p69 = por %p67, %p68
    %p71 = scmp.ne.s32.totalorder %s54, %s70
    %p72 = scmp.eq.s32.totalorder %s20, 0
    %p73 = por %p71, %p72
    %s75 = sadd.s32 %s74, 1
    %p78 = scmp.eq.s32.totalorder %s14, 1
    %p79 = scmp.ne.s32.totalorder %s74, %s76
    %p80 = scmp.eq.s32.totalorder %s14, 0
    %p81 = por %p79, %p80
    %p82 = scmp.ne.s32.totalorder %s74, %s76
    %p83 = scmp.eq.s32.totalorder %s19, 1
    %p84 = por %p82, %p83
    %p85 = scmp.ne.s32.totalorder %s76, %s77
    %p86 = scmp.eq.s32.totalorder %s19, 0
    %p87 = por %p85, %p86
    %p88 = scmp.ne.s32.totalorder %s76, %s77
    %p89 = scmp.eq.s32.totalorder %s20, 1
    %p90 = por %p88, %p89
    %p92 = scmp.ne.s32.totalorder %s77, %s91
    %p93 = scmp.eq.s32.totalorder %s20, 0
    %p94 = por %p92, %p93
    %s96 = sadd.s32 %s95, 1
    %p99 = scmp.eq.s32.totalorder %s14, 1
    %p100 = scmp.ne.s32.totalorder %s95, %s97
    %p101 = scmp.eq.s32.totalorder %s14, 0
    %p102 = por %p100, %p101
    %p103 = scmp.ne.s32.totalorder %s95, %s97
    %p104 = scmp.eq.s32.totalorder %s19, 1
    %p105 = por %p103, %p104
    %p106 = scmp.ne.s32.totalorder %s97, %s98
    %p107 = scmp.eq.s32.totalorder %s19, 0
    %p108 = por %p106, %p107
    %p109 = scmp.ne.s32.totalorder %s97, %s98
    %p110 = scmp.eq.s32.totalorder %s20, 1
    %p111 = por %p109, %p110
    %p113 = scmp.ne.s32.totalorder %s98, %s112
    %p114 = scmp.eq.s32.totalorder %s20, 0
    %p115 = por %p113, %p114
    %s117 = sadd.s32 %s116, 1
    %p120 = scmp.eq.s32.totalorder %s14, 1
    %p121 = scmp.ne.s32.totalorder %s116, %s118
    %p122 = scmp.eq.s32.totalorder %s14, 0
    %p123 = por %p121, %p122
    %p124 = scmp.ne.s32.totalorder %s116, %s118
    %p125 = scmp.eq.s32.totalorder %s19, 1
    %p126 = por %p124, %p125
    %p127 = scmp.ne.s32.totalorder %s118, %s119
    %p128 = scmp.eq.s32.totalorder %s19, 0
    %p129 = por %p127, %p128
    %p130 = scmp.ne.s32.totalorder %s118, %s119
    %p131 = scmp.eq.s32.totalorder %s20, 1
    %p132 = por %p130, %p131
    %p134 = scmp.ne.s32.totalorder %s119, %s133
    %p135 = scmp.eq.s32.totalorder %s20, 0
    %p136 = por %p134, %p135
    %s138 = sadd.s32 %s137, 1
    %p141 = scmp.eq.s32.totalorder %s14, 1
    %p142 = scmp.ne.s32.totalorder %s137, %s139
    %p143 = scmp.eq.s32.totalorder %s14, 0
    %p144 = por %p142, %p143
    %p145 = scmp.ne.s32.totalorder %s137, %s139
    %p146 = scmp.eq.s32.totalorder %s19, 1
    %p147 = por %p145, %p146
    %p148 = scmp.ne.s32.totalorder %s139, %s140
    %p149 = scmp.eq.s32.totalorder %s19, 0
    %p150 = por %p148, %p149
    %p151 = scmp.ne.s32.totalorder %s139, %s140
    %p152 = scmp.eq.s32.totalorder %s20, 1
    %p153 = por %p151, %p152
    %p155 = scmp.ne.s32.totalorder %s140, %s154
    %p156 = scmp.eq.s32.totalorder %s20, 0
    %p157 = por %p155, %p156
    %s159 = sadd.s32 %s158, 1
    %p162 = scmp.eq.s32.totalorder %s14, 1
    %p163 = scmp.ne.s32.totalorder %s158, %s160
    %p164 = scmp.eq.s32.totalorder %s14, 0
    %p165 = por %p163, %p164
    %p166 = scmp.ne.s32.totalorder %s158, %s160
    %p167 = scmp.eq.s32.totalorder %s19, 1
    %p168 = por %p166, %p167
    %p169 = scmp.ne.s32.totalorder %s160, %s161
    %p170 = scmp.eq.s32.totalorder %s19, 0
    %p171 = por %p169, %p170
    %p172 = scmp.ne.s32.totalorder %s160, %s161
    %p173 = scmp.eq.s32.totalorder %s20, 1
    %p174 = por %p172, %p173
    %p176 = scmp.ne.s32.totalorder %s161, %s175
    %p177 = scmp.eq.s32.totalorder %s20, 0
    %p178 = por %p176, %p177
    %s180 = sadd.s32 %s179, 1
    %p183 = scmp.eq.s32.totalorder %s14, 1
    %p184 = scmp.ne.s32.totalorder %s179, %s181
    %p185 = scmp.eq.s32.totalorder %s14, 0
    %p186 = por %p184, %p185
    %p187 = scmp.ne.s32.totalorder %s179, %s181
    %p188 = scmp.eq.s32.totalorder %s19, 1
    %p189 = por %p187, %p188
    %p190 = scmp.ne.s32.totalorder %s181, %s182
    %p191 = scmp.eq.s32.totalorder %s19, 0
    %p192 = por %p190, %p191
    %p193 = scmp.ne.s32.totalorder %s181, %s182
    %p194 = scmp.eq.s32.totalorder %s20, 1
    %p195 = por %p193, %p194
    %p197 = scmp.ne.s32.totalorder %s182, %s196
    %p198 = scmp.eq.s32.totalorder %s20, 0
    %p199 = por %p197, %p198
    %s200 = ssub.s32 %s14, %s21
    %p201 = scmp.eq.s32.totalorder %s200, 0
    %s203 = sadd.s32 %s202, 1
    %s204 = scalar_select %p201, %s202, %s203
    %p207 = pneg %p201
    %p208 = scmp.eq.s32.totalorder %s14, 1
    %p209 = por %p207, %p208
    %p210 = scmp.ne.s32.totalorder %s202, %s205
    %p211 = scmp.eq.s32.totalorder %s14, 0
    %p212 = por %p210, %p211
    %p213 = scmp.ne.s32.totalorder %s202, %s205
    %p214 = scmp.eq.s32.totalorder %s19, 1
    %p215 = por %p213, %p214
    %p216 = scmp.ne.s32.totalorder %s205, %s206
    %p217 = scmp.eq.s32.totalorder %s19, 0
    %p218 = por %p216, %p217
    %p219 = scmp.ne.s32.totalorder %s205, %s206
    %p220 = scmp.eq.s32.totalorder %s20, 1
    %p221 = por %p219, %p220
    %p223 = scmp.ne.s32.totalorder %s206, %s222
    %p224 = scmp.eq.s32.totalorder %s20, 0
    %p225 = por %p223, %p224
    %p226 = scmp.le.s32.totalorder 1, %s14
    %p227 = scmp.lt.s32.totalorder %s14, 3
    %p228 = pnand %p226, %p227
    %p229 = pneg %p228
    // Predicated region
    $region9: #{agent_controller_film.1} parent=5 // pred_check
      _
    $region10: #{agent_controller_film.1} parent=5 // pred_check_branch
      %231 = sbr.rel (%p228) target = $region12
    $region11: #{agent_controller_film.1} parent=5 // pred_region
      %s232 = ssub.s32 %s14, 1
      // Predicated region
      $region13: #{agent_controller_film.1} parent=11 // pred_check
        %p233 = pneg %p87
      $region14: #{agent_controller_film.1} parent=11 // pred_check_branch
        %235 = sbr.rel (%p233) target = $region16
      $region15: #{agent_controller_film.1} parent=11 // pred_region
        _
      $region16: #{agent_controller_film.1} parent=11 // pred_fallthru
        _
      // Predicated region
      $region17: #{agent_controller_film.1} parent=11 // pred_check
        %p236 = pneg %p108
      $region18: #{agent_controller_film.1} parent=11 // pred_check_branch
        %238 = sbr.rel (%p236) target = $region20
      $region19: #{agent_controller_film.1} parent=11 // pred_region
        _
      $region20: #{agent_controller_film.1} parent=11 // pred_fallthru
        _
      // Predicated region
      $region21: #{agent_controller_film.1} parent=11 // pred_check
        %p239 = pneg %p129
      $region22: #{agent_controller_film.1} parent=11 // pred_check_branch
        %241 = sbr.rel (%p239) target = $region24
      $region23: #{agent_controller_film.1} parent=11 // pred_region
        _
      $region24: #{agent_controller_film.1} parent=11 // pred_fallthru
        _
      // Predicated region
      $region25: #{agent_controller_film.1} parent=11 // pred_check
        %p242 = pneg %p150
      $region26: #{agent_controller_film.1} parent=11 // pred_check_branch
        %244 = sbr.rel (%p242) target = $region28
      $region27: #{agent_controller_film.1} parent=11 // pred_region
        _
      $region28: #{agent_controller_film.1} parent=11 // pred_fallthru
        _
      // Predicated region
      $region29: #{agent_controller_film.1} parent=11 // pred_check
        %p245 = pneg %p171
      $region30: #{agent_controller_film.1} parent=11 // pred_check_branch
        %247 = sbr.rel (%p245) target = $region32
      $region31: #{agent_controller_film.1} parent=11 // pred_region
        _
      $region32: #{agent_controller_film.1} parent=11 // pred_fallthru
        _
      // Predicated region
      $region33: #{agent_controller_film.1} parent=11 // pred_check
        %p248 = pneg %p192
      $region34: #{agent_controller_film.1} parent=11 // pred_check_branch
        %250 = sbr.rel (%p248) target = $region36
      $region35: #{agent_controller_film.1} parent=11 // pred_region
        _
      $region36: #{agent_controller_film.1} parent=11 // pred_fallthru
        _
    $region12: #{agent_controller_film.1} parent=5 // pred_fallthru
      _
    %p251 = scmp.lt.s32.totalorder %s14, 2
    // Predicated region
    $region37: #{agent_controller_film.1} parent=5 // pred_check
      %p252 = pneg %p251
    $region38: #{agent_controller_film.1} parent=5 // pred_check_branch
      %254 = sbr.rel (%p252) target = $region40
    $region39: #{agent_controller_film.1} parent=5 // pred_region
      // Predicated region
      $region41: #{agent_controller_film.1} parent=39 // pred_check
        %p255 = pneg %p34
      $region42: #{agent_controller_film.1} parent=39 // pred_check_branch
        %257 = sbr.rel (%p255) target = $region44
      $region43: #{agent_controller_film.1} parent=39 // pred_region
        %p258 = scmp.lt.s32.totalorder %s14, 1
        %s259 = scalar_select %p258, %s14, 1
        %s260 = smul.addr %s259, 2
        %s261 = smul.addr %s260, 2
        %s262 = scalar_lea.vmem %s0, %s261
      $region44: #{agent_controller_film.1} parent=39 // pred_fallthru
        _
      // Predicated region
      $region45: #{agent_controller_film.1} parent=39 // pred_check
        %p263 = pneg %p60
      $region46: #{agent_controller_film.1} parent=39 // pred_check_branch
        %265 = sbr.rel (%p263) target = $region48
      $region47: #{agent_controller_film.1} parent=39 // pred_region
        %p266 = scmp.lt.s32.totalorder %s14, 1
        %s267 = scalar_select %p266, %s14, 1
        %s268 = scalar_lea.vmem %s1, %s267
      $region48: #{agent_controller_film.1} parent=39 // pred_fallthru
        _
    $region40: #{agent_controller_film.1} parent=5 // pred_fallthru
      _
    %p269 = scmp.le.s32.totalorder 1, %s14
    %p270 = scmp.lt.s32.totalorder %s14, 3
    %p271 = pnand %p269, %p270
    %p272 = pneg %p271
    // Predicated region
    $region49: #{agent_controller_film.1} parent=5 // pred_check
      _
    $region50: #{agent_controller_film.1} parent=5 // pred_check_branch
      %274 = sbr.rel (%p271) target = $region52
    $region51: #{agent_controller_film.1} parent=5 // pred_region
      %s275 = ssub.s32 %s14, 1
      %p276 = scmp.lt.s32.totalorder %s19, 1
      %s277 = scalar_select %p276, %s19, 1
      %s278 = smul.addr %s277, 2
      %s279 = smul.addr %s278, 2
      %s280 = scalar_lea.vmem %s0, %s279
      %p281 = pneg %p40
      %p282 = pneg %p37
      %p283 = scmp.lt.s32.totalorder %s19, 1
      %s284 = scalar_select %p283, %s19, 1
      %s285 = scalar_lea.vmem %s1, %s284
      %p286 = pneg %p66
      %p287 = pneg %p63
      %p288 = pneg %p87
      %p289 = pneg %p84
      %p290 = pneg %p108
      %p291 = pneg %p105
      %p292 = pneg %p129
      %p293 = pneg %p126
      %p294 = pneg %p150
      %p295 = pneg %p147
      %p296 = pneg %p171
      %p297 = pneg %p168
      %p298 = pneg %p192
      %p299 = pneg %p189
      %p300 = pneg %p218
      %p301 = pneg %p215
      %p302 = scmp.lt.s32.totalorder %s19, 1
      %s303 = scalar_select %p302, %s19, 1
      %s304 = smul.addr %s303, 16
      %s305 = smul.addr %s304, 8
      %s306 = scalar_lea.vmem %s8, %s305
      %p307 = scmp.lt.s32.totalorder %s19, 1
      %s308 = scalar_select %p307, %s19, 1
      %s309 = smul.addr %s308, 2
      %s310 = smul.addr %s309, 2
      %s311 = scalar_lea.vmem %s0, %s310
      %p312 = scmp.lt.s32.totalorder %s19, 1
      %s313 = scalar_select %p312, %s19, 1
      %s314 = scalar_lea.vmem %s1, %s313
      %p315 = scmp.lt.s32.totalorder %s19, 1
      %s316 = scalar_select %p315, %s19, 1
      %s317 = smul.addr %s316, 16
      %s318 = smul.addr %s317, 8
      %s319 = scalar_lea.vmem %s8, %s318
      %v320 = vld [vmem:[%s311] sm:$0xf]
      %v321 = vld [vmem:[%s2] sm:$0xf]
      %v322 = vunpack.c.l.bf16 %v321
      %v323 = vunpack.c.l.bf16 %v320
      %325 = vset.pattern.permute.xlu0 0
      %326 = vperm.xlu0 %325, %v322
      %v327 = vpop.permute.xlu0 %326
      %v330 = vlaneseq
      %v331 = vshrl.u32 %v330, 7
      %v332 = vsub.s32 0, %v331
      %v333 = vrot.slane %v323, %v332
      %v334 = vlaneseq
      %v335 = vshrl.u32 %v334, 7
      %v336 = vsub.s32 4, %v335
      %v337 = vrot.slane %v323, %v336
      %v340 = vlaneseq
      %v341 = vshrl.u32 %v340, 7
      %v342 = vsub.s32 0, %v341
      %v343 = vrot.slane %v333, %v342
      %v344 = vlaneseq
      %v345 = vshrl.u32 %v344, 7
      %v346 = vsub.s32 0, %v345
      %v347 = vrot.slane %v337, %v346
      %v348 = vmul.f32 %v327, %v343
      %v349 = vmul.f32 %v327, %v347
      %350 = vset.pattern.permute.xlu0 1
      %351 = vperm.xlu0 %350, %v322
      %v352 = vpop.permute.xlu0 %351
      %v354 = vlaneseq
      %v355 = vshrl.u32 %v354, 7
      %v356 = vsub.s32 1, %v355
      %v357 = vrot.slane %v323, %v356
      %v358 = vlaneseq
      %v359 = vshrl.u32 %v358, 7
      %v360 = vsub.s32 5, %v359
      %v361 = vrot.slane %v323, %v360
      %v364 = vlaneseq
      %v365 = vshrl.u32 %v364, 7
      %v366 = vsub.s32 1, %v365
      %v367 = vrot.slane %v357, %v366
      %v368 = vlaneseq
      %v369 = vshrl.u32 %v368, 7
      %v370 = vsub.s32 1, %v369
      %v371 = vrot.slane %v361, %v370
      %v372 = vmul.f32 %v352, %v367
      %v373 = vmul.f32 %v352, %v371
      %v374 = vadd.f32 %v348, %v372
      %v375 = vadd.f32 %v349, %v373
      %376 = vset.pattern.permute.xlu0 2
      %377 = vperm.xlu0 %376, %v322
      %v378 = vpop.permute.xlu0 %377
      %v380 = vlaneseq
      %v381 = vshrl.u32 %v380, 7
      %v382 = vsub.s32 2, %v381
      %v383 = vrot.slane %v323, %v382
      %v384 = vlaneseq
      %v385 = vshrl.u32 %v384, 7
      %v386 = vsub.s32 6, %v385
      %v387 = vrot.slane %v323, %v386
      %v390 = vlaneseq
      %v391 = vshrl.u32 %v390, 7
      %v392 = vsub.s32 2, %v391
      %v393 = vrot.slane %v383, %v392
      %v394 = vlaneseq
      %v395 = vshrl.u32 %v394, 7
      %v396 = vsub.s32 2, %v395
      %v397 = vrot.slane %v387, %v396
      %v398 = vmul.f32 %v378, %v393
      %v399 = vmul.f32 %v378, %v397
      %v400 = vadd.f32 %v374, %v398
      %v401 = vadd.f32 %v375, %v399
      %402 = vset.pattern.permute.xlu0 3
      %403 = vperm.xlu0 %402, %v322
      %v404 = vpop.permute.xlu0 %403
      %v406 = vlaneseq
      %v407 = vshrl.u32 %v406, 7
      %v408 = vsub.s32 3, %v407
      %v409 = vrot.slane %v323, %v408
      %v410 = vlaneseq
      %v411 = vshrl.u32 %v410, 7
      %v412 = vsub.s32 7, %v411
      %v413 = vrot.slane %v323, %v412
      %v416 = vlaneseq
      %v417 = vshrl.u32 %v416, 7
      %v418 = vsub.s32 3, %v417
      %v419 = vrot.slane %v409, %v418
      %v420 = vlaneseq
      %v421 = vshrl.u32 %v420, 7
      %v422 = vsub.s32 3, %v421
      %v423 = vrot.slane %v413, %v422
      %v424 = vmul.f32 %v404, %v419
      %v425 = vmul.f32 %v404, %v423
      %v426 = vadd.f32 %v400, %v424
      %v427 = vadd.f32 %v401, %v425
      %v428 = vld [vmem:[%s3] sm:$0xff]
      %430 = vset.pattern.permute.xlu0 0
      %431 = vperm.xlu0 %430, %v428
      %v432 = vpop.permute.xlu0 %431
      %v434 = vadd.f32 %v426, %v432
      %v435 = vadd.f32 %v427, %v432
      %v436 = vmax.f32 %v434, 0.0
      %v437 = vmax.f32 %v435, 0.0
      %v438 = vld [vmem:[%s4] sm:$0xf]
      %v439 = vld [vmem:[%s4 + $0x4] sm:$0xf]
      %v440 = vld [vmem:[%s4 + $0x8] sm:$0xf]
      %v441 = vld [vmem:[%s4 + $0xc] sm:$0xf]
      %v442 = vld [vmem:[%s4 + $0x10] sm:$0xf]
      %v443 = vld [vmem:[%s4 + $0x14] sm:$0xf]
      %v444 = vld [vmem:[%s4 + $0x18] sm:$0xf]
      %v445 = vld [vmem:[%s4 + $0x1c] sm:$0xf]
      %v446 = vunpack.c.l.bf16 %v438
      %v447 = vunpack.c.l.bf16 %v439
      %v448 = vunpack.c.l.bf16 %v440
      %v449 = vunpack.c.l.bf16 %v441
      %v450 = vunpack.c.l.bf16 %v442
      %v451 = vunpack.c.l.bf16 %v443
      %v452 = vunpack.c.l.bf16 %v444
      %v453 = vunpack.c.l.bf16 %v445
      %455 = vset.pattern.permute.xlu0 0
      %456 = vperm.xlu0 %455, %v446
      %v457 = vpop.permute.xlu0 %456
      %460 = vset.pattern.permute.xlu0 0
      %461 = vperm.xlu0 %460, %v447
      %v462 = vpop.permute.xlu0 %461
      %465 = vset.pattern.permute.xlu0 0
      %466 = vperm.xlu0 %465, %v448
      %v467 = vpop.permute.xlu0 %466
      %470 = vset.pattern.permute.xlu0 0
      %471 = vperm.xlu0 %470, %v449
      %v472 = vpop.permute.xlu0 %471
      %475 = vset.pattern.permute.xlu0 0
      %476 = vperm.xlu0 %475, %v450
      %v477 = vpop.permute.xlu0 %476
      %480 = vset.pattern.permute.xlu0 0
      %481 = vperm.xlu0 %480, %v451
      %v482 = vpop.permute.xlu0 %481
      %485 = vset.pattern.permute.xlu0 0
      %486 = vperm.xlu0 %485, %v452
      %v487 = vpop.permute.xlu0 %486
      %490 = vset.pattern.permute.xlu0 0
      %491 = vperm.xlu0 %490, %v453
      %v492 = vpop.permute.xlu0 %491
      %v494 = vlaneseq
      %v495 = vshrl.u32 %v494, 7
      %v496 = vsub.s32 0, %v495
      %v497 = vrot.slane %v436, %v496
      %v498 = vlaneseq
      %v499 = vshrl.u32 %v498, 7
      %v500 = vsub.s32 0, %v499
      %v501 = vrot.slane %v437, %v500
      %v502 = vmul.f32 %v457, %v497
      %v503 = vmul.f32 %v457, %v501
      %v504 = vmul.f32 %v462, %v497
      %v505 = vmul.f32 %v462, %v501
      %v506 = vmul.f32 %v467, %v497
      %v507 = vmul.f32 %v467, %v501
      %v508 = vmul.f32 %v472, %v497
      %v509 = vmul.f32 %v472, %v501
      %v510 = vmul.f32 %v477, %v497
      %v511 = vmul.f32 %v477, %v501
      %v512 = vmul.f32 %v482, %v497
      %v513 = vmul.f32 %v482, %v501
      %v514 = vmul.f32 %v487, %v497
      %v515 = vmul.f32 %v487, %v501
      %v516 = vmul.f32 %v492, %v497
      %v517 = vmul.f32 %v492, %v501
      %518 = vset.pattern.permute.xlu0 1
      %519 = vperm.xlu0 %518, %v446
      %v520 = vpop.permute.xlu0 %519
      %522 = vset.pattern.permute.xlu0 1
      %523 = vperm.xlu0 %522, %v447
      %v524 = vpop.permute.xlu0 %523
      %526 = vset.pattern.permute.xlu0 1
      %527 = vperm.xlu0 %526, %v448
      %v528 = vpop.permute.xlu0 %527
      %530 = vset.pattern.permute.xlu0 1
      %531 = vperm.xlu0 %530, %v449
      %v532 = vpop.permute.xlu0 %531
      %534 = vset.pattern.permute.xlu0 1
      %535 = vperm.xlu0 %534, %v450
      %v536 = vpop.permute.xlu0 %535
      %538 = vset.pattern.permute.xlu0 1
      %539 = vperm.xlu0 %538, %v451
      %v540 = vpop.permute.xlu0 %539
      %542 = vset.pattern.permute.xlu0 1
      %543 = vperm.xlu0 %542, %v452
      %v544 = vpop.permute.xlu0 %543
      %546 = vset.pattern.permute.xlu0 1
      %547 = vperm.xlu0 %546, %v453
      %v548 = vpop.permute.xlu0 %547
      %v550 = vlaneseq
      %v551 = vshrl.u32 %v550, 7
      %v552 = vsub.s32 1, %v551
      %v553 = vrot.slane %v436, %v552
      %v554 = vlaneseq
      %v555 = vshrl.u32 %v554, 7
      %v556 = vsub.s32 1, %v555
      %v557 = vrot.slane %v437, %v556
      %v558 = vmul.f32 %v520, %v553
      %v559 = vmul.f32 %v520, %v557
      %v560 = vmul.f32 %v524, %v553
      %v561 = vmul.f32 %v524, %v557
      %v562 = vmul.f32 %v528, %v553
      %v563 = vmul.f32 %v528, %v557
      %v564 = vmul.f32 %v532, %v553
      %v565 = vmul.f32 %v532, %v557
      %v566 = vmul.f32 %v536, %v553
      %v567 = vmul.f32 %v536, %v557
      %v568 = vmul.f32 %v540, %v553
      %v569 = vmul.f32 %v540, %v557
      %v570 = vmul.f32 %v544, %v553
      %v571 = vmul.f32 %v544, %v557
      %v572 = vmul.f32 %v548, %v553
      %v573 = vmul.f32 %v548, %v557
      %v574 = vadd.f32 %v502, %v558
      %v575 = vadd.f32 %v503, %v559
      %v576 = vadd.f32 %v504, %v560
      %v577 = vadd.f32 %v505, %v561
      %v578 = vadd.f32 %v506, %v562
      %v579 = vadd.f32 %v507, %v563
      %v580 = vadd.f32 %v508, %v564
      %v581 = vadd.f32 %v509, %v565
      %v582 = vadd.f32 %v510, %v566
      %v583 = vadd.f32 %v511, %v567
      %v584 = vadd.f32 %v512, %v568
      %v585 = vadd.f32 %v513, %v569
      %v586 = vadd.f32 %v514, %v570
      %v587 = vadd.f32 %v515, %v571
      %v588 = vadd.f32 %v516, %v572
      %v589 = vadd.f32 %v517, %v573
      %590 = vset.pattern.permute.xlu0 2
      %591 = vperm.xlu0 %590, %v446
      %v592 = vpop.permute.xlu0 %591
      %594 = vset.pattern.permute.xlu0 2
      %595 = vperm.xlu0 %594, %v447
      %v596 = vpop.permute.xlu0 %595
      %598 = vset.pattern.permute.xlu0 2
      %599 = vperm.xlu0 %598, %v448
      %v600 = vpop.permute.xlu0 %599
      %602 = vset.pattern.permute.xlu0 2
      %603 = vperm.xlu0 %602, %v449
      %v604 = vpop.permute.xlu0 %603
      %606 = vset.pattern.permute.xlu0 2
      %607 = vperm.xlu0 %606, %v450
      %v608 = vpop.permute.xlu0 %607
      %610 = vset.pattern.permute.xlu0 2
      %611 = vperm.xlu0 %610, %v451
      %v612 = vpop.permute.xlu0 %611
      %614 = vset.pattern.permute.xlu0 2
      %615 = vperm.xlu0 %614, %v452
      %v616 = vpop.permute.xlu0 %615
      %618 = vset.pattern.permute.xlu0 2
      %619 = vperm.xlu0 %618, %v453
      %v620 = vpop.permute.xlu0 %619
      %v622 = vlaneseq
      %v623 = vshrl.u32 %v622, 7
      %v624 = vsub.s32 2, %v623
      %v625 = vrot.slane %v436, %v624
      %v626 = vlaneseq
      %v627 = vshrl.u32 %v626, 7
      %v628 = vsub.s32 2, %v627
      %v629 = vrot.slane %v437, %v628
      %v630 = vmul.f32 %v592, %v625
      %v631 = vmul.f32 %v592, %v629
      %v632 = vmul.f32 %v596, %v625
      %v633 = vmul.f32 %v596, %v629
      %v634 = vmul.f32 %v600, %v625
      %v635 = vmul.f32 %v600, %v629
      %v636 = vmul.f32 %v604, %v625
      %v637 = vmul.f32 %v604, %v629
      %v638 = vmul.f32 %v608, %v625
      %v639 = vmul.f32 %v608, %v629
      %v640 = vmul.f32 %v612, %v625
      %v641 = vmul.f32 %v612, %v629
      %v642 = vmul.f32 %v616, %v625
      %v643 = vmul.f32 %v616, %v629
      %v644 = vmul.f32 %v620, %v625
      %v645 = vmul.f32 %v620, %v629
      %v646 = vadd.f32 %v574, %v630
      %v647 = vadd.f32 %v575, %v631
      %v648 = vadd.f32 %v576, %v632
      %v649 = vadd.f32 %v577, %v633
      %v650 = vadd.f32 %v578, %v634
      %v651 = vadd.f32 %v579, %v635
      %v652 = vadd.f32 %v580, %v636
      %v653 = vadd.f32 %v581, %v637
      %v654 = vadd.f32 %v582, %v638
      %v655 = vadd.f32 %v583, %v639
      %v656 = vadd.f32 %v584, %v640
      %v657 = vadd.f32 %v585, %v641
      %v658 = vadd.f32 %v586, %v642
      %v659 = vadd.f32 %v587, %v643
      %v660 = vadd.f32 %v588, %v644
      %v661 = vadd.f32 %v589, %v645
      %662 = vset.pattern.permute.xlu0 3
      %663 = vperm.xlu0 %662, %v446
      %v664 = vpop.permute.xlu0 %663
      %666 = vset.pattern.permute.xlu0 3
      %667 = vperm.xlu0 %666, %v447
      %v668 = vpop.permute.xlu0 %667
      %670 = vset.pattern.permute.xlu0 3
      %671 = vperm.xlu0 %670, %v448
      %v672 = vpop.permute.xlu0 %671
      %674 = vset.pattern.permute.xlu0 3
      %675 = vperm.xlu0 %674, %v449
      %v676 = vpop.permute.xlu0 %675
      %678 = vset.pattern.permute.xlu0 3
      %679 = vperm.xlu0 %678, %v450
      %v680 = vpop.permute.xlu0 %679
      %682 = vset.pattern.permute.xlu0 3
      %683 = vperm.xlu0 %682, %v451
      %v684 = vpop.permute.xlu0 %683
      %686 = vset.pattern.permute.xlu0 3
      %687 = vperm.xlu0 %686, %v452
      %v688 = vpop.permute.xlu0 %687
      %690 = vset.pattern.permute.xlu0 3
      %691 = vperm.xlu0 %690, %v453
      %v692 = vpop.permute.xlu0 %691
      %v694 = vlaneseq
      %v695 = vshrl.u32 %v694, 7
      %v696 = vsub.s32 3, %v695
      %v697 = vrot.slane %v436, %v696
      %v698 = vlaneseq
      %v699 = vshrl.u32 %v698, 7
      %v700 = vsub.s32 3, %v699
      %v701 = vrot.slane %v437, %v700
      %v702 = vmul.f32 %v664, %v697
      %v703 = vmul.f32 %v664, %v701
      %v704 = vmul.f32 %v668, %v697
      %v705 = vmul.f32 %v668, %v701
      %v706 = vmul.f32 %v672, %v697
      %v707 = vmul.f32 %v672, %v701
      %v708 = vmul.f32 %v676, %v697
      %v709 = vmul.f32 %v676, %v701
      %v710 = vmul.f32 %v680, %v697
      %v711 = vmul.f32 %v680, %v701
      %v712 = vmul.f32 %v684, %v697
      %v713 = vmul.f32 %v684, %v701
      %v714 = vmul.f32 %v688, %v697
      %v715 = vmul.f32 %v688, %v701
      %v716 = vmul.f32 %v692, %v697
      %v717 = vmul.f32 %v692, %v701
      %v718 = vadd.f32 %v646, %v702
      %v719 = vadd.f32 %v647, %v703
      %v720 = vadd.f32 %v648, %v704
      %v721 = vadd.f32 %v649, %v705
      %v722 = vadd.f32 %v650, %v706
      %v723 = vadd.f32 %v651, %v707
      %v724 = vadd.f32 %v652, %v708
      %v725 = vadd.f32 %v653, %v709
      %v726 = vadd.f32 %v654, %v710
      %v727 = vadd.f32 %v655, %v711
      %v728 = vadd.f32 %v656, %v712
      %v729 = vadd.f32 %v657, %v713
      %v730 = vadd.f32 %v658, %v714
      %v731 = vadd.f32 %v659, %v715
      %v732 = vadd.f32 %v660, %v716
      %v733 = vadd.f32 %v661, %v717
      %734 = vset.pattern.permute.xlu0 4
      %735 = vperm.xlu0 %734, %v446
      %v736 = vpop.permute.xlu0 %735
      %738 = vset.pattern.permute.xlu0 4
      %739 = vperm.xlu0 %738, %v447
      %v740 = vpop.permute.xlu0 %739
      %742 = vset.pattern.permute.xlu0 4
      %743 = vperm.xlu0 %742, %v448
      %v744 = vpop.permute.xlu0 %743
      %746 = vset.pattern.permute.xlu0 4
      %747 = vperm.xlu0 %746, %v449
      %v748 = vpop.permute.xlu0 %747
      %750 = vset.pattern.permute.xlu0 4
      %751 = vperm.xlu0 %750, %v450
      %v752 = vpop.permute.xlu0 %751
      %754 = vset.pattern.permute.xlu0 4
      %755 = vperm.xlu0 %754, %v451
      %v756 = vpop.permute.xlu0 %755
      %758 = vset.pattern.permute.xlu0 4
      %759 = vperm.xlu0 %758, %v452
      %v760 = vpop.permute.xlu0 %759
      %762 = vset.pattern.permute.xlu0 4
      %763 = vperm.xlu0 %762, %v453
      %v764 = vpop.permute.xlu0 %763
      %v766 = vlaneseq
      %v767 = vshrl.u32 %v766, 7
      %v768 = vsub.s32 4, %v767
      %v769 = vrot.slane %v436, %v768
      %v770 = vlaneseq
      %v771 = vshrl.u32 %v770, 7
      %v772 = vsub.s32 4, %v771
      %v773 = vrot.slane %v437, %v772
      %v774 = vmul.f32 %v736, %v769
      %v775 = vmul.f32 %v736, %v773
      %v776 = vmul.f32 %v740, %v769
      %v777 = vmul.f32 %v740, %v773
      %v778 = vmul.f32 %v744, %v769
      %v779 = vmul.f32 %v744, %v773
      %v780 = vmul.f32 %v748, %v769
      %v781 = vmul.f32 %v748, %v773
      %v782 = vmul.f32 %v752, %v769
      %v783 = vmul.f32 %v752, %v773
      %v784 = vmul.f32 %v756, %v769
      %v785 = vmul.f32 %v756, %v773
      %v786 = vmul.f32 %v760, %v769
      %v787 = vmul.f32 %v760, %v773
      %v788 = vmul.f32 %v764, %v769
      %v789 = vmul.f32 %v764, %v773
      %v790 = vadd.f32 %v718, %v774
      %v791 = vadd.f32 %v719, %v775
      %v792 = vadd.f32 %v720, %v776
      %v793 = vadd.f32 %v721, %v777
      %v794 = vadd.f32 %v722, %v778
      %v795 = vadd.f32 %v723, %v779
      %v796 = vadd.f32 %v724, %v780
      %v797 = vadd.f32 %v725, %v781
      %v798 = vadd.f32 %v726, %v782
      %v799 = vadd.f32 %v727, %v783
      %v800 = vadd.f32 %v728, %v784
      %v801 = vadd.f32 %v729, %v785
      %v802 = vadd.f32 %v730, %v786
      %v803 = vadd.f32 %v731, %v787
      %v804 = vadd.f32 %v732, %v788
      %v805 = vadd.f32 %v733, %v789
      %806 = vset.pattern.permute.xlu0 5
      %807 = vperm.xlu0 %806, %v446
      %v808 = vpop.permute.xlu0 %807
      %810 = vset.pattern.permute.xlu0 5
      %811 = vperm.xlu0 %810, %v447
      %v812 = vpop.permute.xlu0 %811
      %814 = vset.pattern.permute.xlu0 5
      %815 = vperm.xlu0 %814, %v448
      %v816 = vpop.permute.xlu0 %815
      %818 = vset.pattern.permute.xlu0 5
      %819 = vperm.xlu0 %818, %v449
      %v820 = vpop.permute.xlu0 %819
      %822 = vset.pattern.permute.xlu0 5
      %823 = vperm.xlu0 %822, %v450
      %v824 = vpop.permute.xlu0 %823
      %826 = vset.pattern.permute.xlu0 5
      %827 = vperm.xlu0 %826, %v451
      %v828 = vpop.permute.xlu0 %827
      %830 = vset.pattern.permute.xlu0 5
      %831 = vperm.xlu0 %830, %v452
      %v832 = vpop.permute.xlu0 %831
      %834 = vset.pattern.permute.xlu0 5
      %835 = vperm.xlu0 %834, %v453
      %v836 = vpop.permute.xlu0 %835
      %v838 = vlaneseq
      %v839 = vshrl.u32 %v838, 7
      %v840 = vsub.s32 5, %v839
      %v841 = vrot.slane %v436, %v840
      %v842 = vlaneseq
      %v843 = vshrl.u32 %v842, 7
      %v844 = vsub.s32 5, %v843
      %v845 = vrot.slane %v437, %v844
      %v846 = vmul.f32 %v808, %v841
      %v847 = vmul.f32 %v808, %v845
      %v848 = vmul.f32 %v812, %v841
      %v849 = vmul.f32 %v812, %v845
      %v850 = vmul.f32 %v816, %v841
      %v851 = vmul.f32 %v816, %v845
      %v852 = vmul.f32 %v820, %v841
      %v853 = vmul.f32 %v820, %v845
      %v854 = vmul.f32 %v824, %v841
      %v855 = vmul.f32 %v824, %v845
      %v856 = vmul.f32 %v828, %v841
      %v857 = vmul.f32 %v828, %v845
      %v858 = vmul.f32 %v832, %v841
      %v859 = vmul.f32 %v832, %v845
      %v860 = vmul.f32 %v836, %v841
      %v861 = vmul.f32 %v836, %v845
      %v862 = vadd.f32 %v790, %v846
      %v863 = vadd.f32 %v791, %v847
      %v864 = vadd.f32 %v792, %v848
      %v865 = vadd.f32 %v793, %v849
      %v866 = vadd.f32 %v794, %v850
      %v867 = vadd.f32 %v795, %v851
      %v868 = vadd.f32 %v796, %v852
      %v869 = vadd.f32 %v797, %v853
      %v870 = vadd.f32 %v798, %v854
      %v871 = vadd.f32 %v799, %v855
      %v872 = vadd.f32 %v800, %v856
      %v873 = vadd.f32 %v801, %v857
      %v874 = vadd.f32 %v802, %v858
      %v875 = vadd.f32 %v803, %v859
      %v876 = vadd.f32 %v804, %v860
      %v877 = vadd.f32 %v805, %v861
      %878 = vset.pattern.permute.xlu0 6
      %879 = vperm.xlu0 %878, %v446
      %v880 = vpop.permute.xlu0 %879
      %882 = vset.pattern.permute.xlu0 6
      %883 = vperm.xlu0 %882, %v447
      %v884 = vpop.permute.xlu0 %883
      %886 = vset.pattern.permute.xlu0 6
      %887 = vperm.xlu0 %886, %v448
      %v888 = vpop.permute.xlu0 %887
      %890 = vset.pattern.permute.xlu0 6
      %891 = vperm.xlu0 %890, %v449
      %v892 = vpop.permute.xlu0 %891
      %894 = vset.pattern.permute.xlu0 6
      %895 = vperm.xlu0 %894, %v450
      %v896 = vpop.permute.xlu0 %895
      %898 = vset.pattern.permute.xlu0 6
      %899 = vperm.xlu0 %898, %v451
      %v900 = vpop.permute.xlu0 %899
      %902 = vset.pattern.permute.xlu0 6
      %903 = vperm.xlu0 %902, %v452
      %v904 = vpop.permute.xlu0 %903
      %906 = vset.pattern.permute.xlu0 6
      %907 = vperm.xlu0 %906, %v453
      %v908 = vpop.permute.xlu0 %907
      %v910 = vlaneseq
      %v911 = vshrl.u32 %v910, 7
      %v912 = vsub.s32 6, %v911
      %v913 = vrot.slane %v436, %v912
      %v914 = vlaneseq
      %v915 = vshrl.u32 %v914, 7
      %v916 = vsub.s32 6, %v915
      %v917 = vrot.slane %v437, %v916
      %v918 = vmul.f32 %v880, %v913
      %v919 = vmul.f32 %v880, %v917
      %v920 = vmul.f32 %v884, %v913
      %v921 = vmul.f32 %v884, %v917
      %v922 = vmul.f32 %v888, %v913
      %v923 = vmul.f32 %v888, %v917
      %v924 = vmul.f32 %v892, %v913
      %v925 = vmul.f32 %v892, %v917
      %v926 = vmul.f32 %v896, %v913
      %v927 = vmul.f32 %v896, %v917
      %v928 = vmul.f32 %v900, %v913
      %v929 = vmul.f32 %v900, %v917
      %v930 = vmul.f32 %v904, %v913
      %v931 = vmul.f32 %v904, %v917
      %v932 = vmul.f32 %v908, %v913
      %v933 = vmul.f32 %v908, %v917
      %v934 = vadd.f32 %v862, %v918
      %v935 = vadd.f32 %v863, %v919
      %v936 = vadd.f32 %v864, %v920
      %v937 = vadd.f32 %v865, %v921
      %v938 = vadd.f32 %v866, %v922
      %v939 = vadd.f32 %v867, %v923
      %v940 = vadd.f32 %v868, %v924
      %v941 = vadd.f32 %v869, %v925
      %v942 = vadd.f32 %v870, %v926
      %v943 = vadd.f32 %v871, %v927
      %v944 = vadd.f32 %v872, %v928
      %v945 = vadd.f32 %v873, %v929
      %v946 = vadd.f32 %v874, %v930
      %v947 = vadd.f32 %v875, %v931
      %v948 = vadd.f32 %v876, %v932
      %v949 = vadd.f32 %v877, %v933
      %950 = vset.pattern.permute.xlu0 7
      %951 = vperm.xlu0 %950, %v446
      %v952 = vpop.permute.xlu0 %951
      %954 = vset.pattern.permute.xlu0 7
      %955 = vperm.xlu0 %954, %v447
      %v956 = vpop.permute.xlu0 %955
      %958 = vset.pattern.permute.xlu0 7
      %959 = vperm.xlu0 %958, %v448
      %v960 = vpop.permute.xlu0 %959
      %962 = vset.pattern.permute.xlu0 7
      %963 = vperm.xlu0 %962, %v449
      %v964 = vpop.permute.xlu0 %963
      %966 = vset.pattern.permute.xlu0 7
      %967 = vperm.xlu0 %966, %v450
      %v968 = vpop.permute.xlu0 %967
      %970 = vset.pattern.permute.xlu0 7
      %971 = vperm.xlu0 %970, %v451
      %v972 = vpop.permute.xlu0 %971
      %974 = vset.pattern.permute.xlu0 7
      %975 = vperm.xlu0 %974, %v452
      %v976 = vpop.permute.xlu0 %975
      %978 = vset.pattern.permute.xlu0 7
      %979 = vperm.xlu0 %978, %v453
      %v980 = vpop.permute.xlu0 %979
      %v982 = vlaneseq
      %v983 = vshrl.u32 %v982, 7
      %v984 = vsub.s32 7, %v983
      %v985 = vrot.slane %v436, %v984
      %v986 = vlaneseq
      %v987 = vshrl.u32 %v986, 7
      %v988 = vsub.s32 7, %v987
      %v989 = vrot.slane %v437, %v988
      %v990 = vmul.f32 %v952, %v985
      %v991 = vmul.f32 %v952, %v989
      %v992 = vmul.f32 %v956, %v985
      %v993 = vmul.f32 %v956, %v989
      %v994 = vmul.f32 %v960, %v985
      %v995 = vmul.f32 %v960, %v989
      %v996 = vmul.f32 %v964, %v985
      %v997 = vmul.f32 %v964, %v989
      %v998 = vmul.f32 %v968, %v985
      %v999 = vmul.f32 %v968, %v989
      %v1000 = vmul.f32 %v972, %v985
      %v1001 = vmul.f32 %v972, %v989
      %v1002 = vmul.f32 %v976, %v985
      %v1003 = vmul.f32 %v976, %v989
      %v1004 = vmul.f32 %v980, %v985
      %v1005 = vmul.f32 %v980, %v989
      %v1006 = vadd.f32 %v934, %v990
      %v1007 = vadd.f32 %v935, %v991
      %v1008 = vadd.f32 %v936, %v992
      %v1009 = vadd.f32 %v937, %v993
      %v1010 = vadd.f32 %v938, %v994
      %v1011 = vadd.f32 %v939, %v995
      %v1012 = vadd.f32 %v940, %v996
      %v1013 = vadd.f32 %v941, %v997
      %v1014 = vadd.f32 %v942, %v998
      %v1015 = vadd.f32 %v943, %v999
      %v1016 = vadd.f32 %v944, %v1000
      %v1017 = vadd.f32 %v945, %v1001
      %v1018 = vadd.f32 %v946, %v1002
      %v1019 = vadd.f32 %v947, %v1003
      %v1020 = vadd.f32 %v948, %v1004
      %v1021 = vadd.f32 %v949, %v1005
      %v1022 = vld [vmem:[%s5] sm:$0xff]
      %v1023 = vld [vmem:[%s5 + $0x8] sm:$0xff]
      %v1024 = vld [vmem:[%s5 + $0x10] sm:$0xff]
      %v1025 = vld [vmem:[%s5 + $0x18] sm:$0xff]
      %v1026 = vld [vmem:[%s5 + $0x20] sm:$0xff]
      %v1027 = vld [vmem:[%s5 + $0x28] sm:$0xff]
      %v1028 = vld [vmem:[%s5 + $0x30] sm:$0xff]
      %v1029 = vld [vmem:[%s5 + $0x38] sm:$0xff]
      %1031 = vset.pattern.permute.xlu0 0
      %1032 = vperm.xlu0 %1031, %v1022
      %v1033 = vpop.permute.xlu0 %1032
      %1036 = vset.pattern.permute.xlu0 0
      %1037 = vperm.xlu0 %1036, %v1023
      %v1038 = vpop.permute.xlu0 %1037
      %1041 = vset.pattern.permute.xlu0 0
      %1042 = vperm.xlu0 %1041, %v1024
      %v1043 = vpop.permute.xlu0 %1042
      %1046 = vset.pattern.permute.xlu0 0
      %1047 = vperm.xlu0 %1046, %v1025
      %v1048 = vpop.permute.xlu0 %1047
      %1051 = vset.pattern.permute.xlu0 0
      %1052 = vperm.xlu0 %1051, %v1026
      %v1053 = vpop.permute.xlu0 %1052
      %1056 = vset.pattern.permute.xlu0 0
      %1057 = vperm.xlu0 %1056, %v1027
      %v1058 = vpop.permute.xlu0 %1057
      %1061 = vset.pattern.permute.xlu0 0
      %1062 = vperm.xlu0 %1061, %v1028
      %v1063 = vpop.permute.xlu0 %1062
      %1066 = vset.pattern.permute.xlu0 0
      %1067 = vperm.xlu0 %1066, %v1029
      %v1068 = vpop.permute.xlu0 %1067
      %v1070 = vadd.f32 %v1006, %v1033
      %v1071 = vadd.f32 %v1007, %v1033
      %v1072 = vadd.f32 %v1008, %v1038
      %v1073 = vadd.f32 %v1009, %v1038
      %v1074 = vadd.f32 %v1010, %v1043
      %v1075 = vadd.f32 %v1011, %v1043
      %v1076 = vadd.f32 %v1012, %v1048
      %v1077 = vadd.f32 %v1013, %v1048
      %v1078 = vadd.f32 %v1014, %v1053
      %v1079 = vadd.f32 %v1015, %v1053
      %v1080 = vadd.f32 %v1016, %v1058
      %v1081 = vadd.f32 %v1017, %v1058
      %v1082 = vadd.f32 %v1018, %v1063
      %v1083 = vadd.f32 %v1019, %v1063
      %v1084 = vadd.f32 %v1020, %v1068
      %v1085 = vadd.f32 %v1021, %v1068
      %v1086 = vmax.f32 %v1070, 0.0
      %v1087 = vmax.f32 %v1071, 0.0
      %v1088 = vmax.f32 %v1072, 0.0
      %v1089 = vmax.f32 %v1073, 0.0
      %v1090 = vmax.f32 %v1074, 0.0
      %v1091 = vmax.f32 %v1075, 0.0
      %v1092 = vmax.f32 %v1076, 0.0
      %v1093 = vmax.f32 %v1077, 0.0
      %v1094 = vmax.f32 %v1078, 0.0
      %v1095 = vmax.f32 %v1079, 0.0
      %v1096 = vmax.f32 %v1080, 0.0
      %v1097 = vmax.f32 %v1081, 0.0
      %v1098 = vmax.f32 %v1082, 0.0
      %v1099 = vmax.f32 %v1083, 0.0
      %v1100 = vmax.f32 %v1084, 0.0
      %v1101 = vmax.f32 %v1085, 0.0
      %v1102 = vld [vmem:[%s6] sm:$0xff]
      %v1103 = vld [vmem:[%s6 + $0x8] sm:$0xff]
      %v1104 = vld [vmem:[%s6 + $0x10] sm:$0xff]
      %v1105 = vld [vmem:[%s6 + $0x18] sm:$0xff]
      %v1106 = vld [vmem:[%s6 + $0x20] sm:$0xff]
      %v1107 = vld [vmem:[%s6 + $0x28] sm:$0xff]
      %v1108 = vld [vmem:[%s6 + $0x30] sm:$0xff]
      %v1109 = vld [vmem:[%s6 + $0x38] sm:$0xff]
      %v1110 = vld [vmem:[%s6 + $0x40] sm:$0xff]
      %v1111 = vld [vmem:[%s6 + $0x48] sm:$0xff]
      %v1112 = vld [vmem:[%s6 + $0x50] sm:$0xff]
      %v1113 = vld [vmem:[%s6 + $0x58] sm:$0xff]
      %v1114 = vld [vmem:[%s6 + $0x60] sm:$0xff]
      %v1115 = vld [vmem:[%s6 + $0x68] sm:$0xff]
      %v1116 = vld [vmem:[%s6 + $0x70] sm:$0xff]
      %v1117 = vld [vmem:[%s6 + $0x78] sm:$0xff]
      %v1118 = vld [vmem:[%s314] sm:$0x1]
      %v1120 = vlaneseq
      %v1121 = vshrl.u32 %v1120, 7
      %v1122 = vsub.s32 0, %v1121
      %v1123 = vrot.slane %v1118, %v1122
      %v1125 = vmul.f32 %v1102, %v1123
      %v1126 = vmul.f32 %v1103, %v1123
      %v1127 = vmul.f32 %v1104, %v1123
      %v1128 = vmul.f32 %v1105, %v1123
      %v1129 = vmul.f32 %v1106, %v1123
      %v1130 = vmul.f32 %v1107, %v1123
      %v1131 = vmul.f32 %v1108, %v1123
      %v1132 = vmul.f32 %v1109, %v1123
      %v1133 = vmul.f32 %v1110, %v1123
      %v1134 = vmul.f32 %v1111, %v1123
      %v1135 = vmul.f32 %v1112, %v1123
      %v1136 = vmul.f32 %v1113, %v1123
      %v1137 = vmul.f32 %v1114, %v1123
      %v1138 = vmul.f32 %v1115, %v1123
      %v1139 = vmul.f32 %v1116, %v1123
      %v1140 = vmul.f32 %v1117, %v1123
      %vm1141 = vcmask 130048
      %v1142 = vsel %vm1141, %v1125, 0.0
      %1143 = vadd.xlane.f32.xlu0 %v1142
      %v1144 = vpop.xlane.xlu0 %1143
      %v1145 = vsel %vm1141, %v1126, 0.0
      %1146 = vadd.xlane.f32.xlu0 %v1145
      %v1147 = vpop.xlane.xlu0 %1146
      %v1148 = vsel %vm1141, %v1127, 0.0
      %1149 = vadd.xlane.f32.xlu0 %v1148
      %v1150 = vpop.xlane.xlu0 %1149
      %v1151 = vsel %vm1141, %v1128, 0.0
      %1152 = vadd.xlane.f32.xlu0 %v1151
      %v1153 = vpop.xlane.xlu0 %1152
      %v1154 = vsel %vm1141, %v1129, 0.0
      %1155 = vadd.xlane.f32.xlu0 %v1154
      %v1156 = vpop.xlane.xlu0 %1155
      %v1157 = vsel %vm1141, %v1130, 0.0
      %1158 = vadd.xlane.f32.xlu0 %v1157
      %v1159 = vpop.xlane.xlu0 %1158
      %v1160 = vsel %vm1141, %v1131, 0.0
      %1161 = vadd.xlane.f32.xlu0 %v1160
      %v1162 = vpop.xlane.xlu0 %1161
      %v1163 = vsel %vm1141, %v1132, 0.0
      %1164 = vadd.xlane.f32.xlu0 %v1163
      %v1165 = vpop.xlane.xlu0 %1164
      %v1166 = vsel %vm1141, %v1133, 0.0
      %1167 = vadd.xlane.f32.xlu0 %v1166
      %v1168 = vpop.xlane.xlu0 %1167
      %v1169 = vsel %vm1141, %v1134, 0.0
      %1170 = vadd.xlane.f32.xlu0 %v1169
      %v1171 = vpop.xlane.xlu0 %1170
      %v1172 = vsel %vm1141, %v1135, 0.0
      %1173 = vadd.xlane.f32.xlu0 %v1172
      %v1174 = vpop.xlane.xlu0 %1173
      %v1175 = vsel %vm1141, %v1136, 0.0
      %1176 = vadd.xlane.f32.xlu0 %v1175
      %v1177 = vpop.xlane.xlu0 %1176
      %v1178 = vsel %vm1141, %v1137, 0.0
      %1179 = vadd.xlane.f32.xlu0 %v1178
      %v1180 = vpop.xlane.xlu0 %1179
      %v1181 = vsel %vm1141, %v1138, 0.0
      %1182 = vadd.xlane.f32.xlu0 %v1181
      %v1183 = vpop.xlane.xlu0 %1182
      %v1184 = vsel %vm1141, %v1139, 0.0
      %1185 = vadd.xlane.f32.xlu0 %v1184
      %v1186 = vpop.xlane.xlu0 %1185
      %v1187 = vsel %vm1141, %v1140, 0.0
      %1188 = vadd.xlane.f32.xlu0 %v1187
      %v1189 = vpop.xlane.xlu0 %1188
      %v1190 = vld [vmem:[%s7] sm:$0xff]
      %v1191 = vld [vmem:[%s7 + $0x8] sm:$0xff]
      %v1192 = vld [vmem:[%s7 + $0x10] sm:$0xff]
      %v1193 = vld [vmem:[%s7 + $0x18] sm:$0xff]
      %v1194 = vld [vmem:[%s7 + $0x20] sm:$0xff]
      %v1195 = vld [vmem:[%s7 + $0x28] sm:$0xff]
      %v1196 = vld [vmem:[%s7 + $0x30] sm:$0xff]
      %v1197 = vld [vmem:[%s7 + $0x38] sm:$0xff]
      %v1198 = vld [vmem:[%s7 + $0x40] sm:$0xff]
      %v1199 = vld [vmem:[%s7 + $0x48] sm:$0xff]
      %v1200 = vld [vmem:[%s7 + $0x50] sm:$0xff]
      %v1201 = vld [vmem:[%s7 + $0x58] sm:$0xff]
      %v1202 = vld [vmem:[%s7 + $0x60] sm:$0xff]
      %v1203 = vld [vmem:[%s7 + $0x68] sm:$0xff]
      %v1204 = vld [vmem:[%s7 + $0x70] sm:$0xff]
      %v1205 = vld [vmem:[%s7 + $0x78] sm:$0xff]
      %v1206 = vadd.f32 %v1144, %v1190
      %v1207 = vadd.f32 %v1147, %v1191
      %v1208 = vadd.f32 %v1150, %v1192
      %v1209 = vadd.f32 %v1153, %v1193
      %v1210 = vadd.f32 %v1156, %v1194
      %v1211 = vadd.f32 %v1159, %v1195
      %v1212 = vadd.f32 %v1162, %v1196
      %v1213 = vadd.f32 %v1165, %v1197
      %v1214 = vadd.f32 %v1168, %v1198
      %v1215 = vadd.f32 %v1171, %v1199
      %v1216 = vadd.f32 %v1174, %v1200
      %v1217 = vadd.f32 %v1177, %v1201
      %v1218 = vadd.f32 %v1180, %v1202
      %v1219 = vadd.f32 %v1183, %v1203
      %v1220 = vadd.f32 %v1186, %v1204
      %v1221 = vadd.f32 %v1189, %v1205
      %1223 = vset.pattern.permute.xlu0 0
      %1224 = vperm.xlu0 %1223, %v1206
      %v1225 = vpop.permute.xlu0 %1224
      %1228 = vset.pattern.permute.xlu0 0
      %1229 = vperm.xlu0 %1228, %v1207
      %v1230 = vpop.permute.xlu0 %1229
      %1233 = vset.pattern.permute.xlu0 0
      %1234 = vperm.xlu0 %1233, %v1208
      %v1235 = vpop.permute.xlu0 %1234
      %1238 = vset.pattern.permute.xlu0 0
      %1239 = vperm.xlu0 %1238, %v1209
      %v1240 = vpop.permute.xlu0 %1239
      %1243 = vset.pattern.permute.xlu0 0
      %1244 = vperm.xlu0 %1243, %v1210
      %v1245 = vpop.permute.xlu0 %1244
      %1248 = vset.pattern.permute.xlu0 0
      %1249 = vperm.xlu0 %1248, %v1211
      %v1250 = vpop.permute.xlu0 %1249
      %1253 = vset.pattern.permute.xlu0 0
      %1254 = vperm.xlu0 %1253, %v1212
      %v1255 = vpop.permute.xlu0 %1254
      %1258 = vset.pattern.permute.xlu0 0
      %1259 = vperm.xlu0 %1258, %v1213
      %v1260 = vpop.permute.xlu0 %1259
      %v1262 = vmul.f32 %v1086, %v1225
      %v1263 = vmul.f32 %v1087, %v1225
      %v1264 = vmul.f32 %v1088, %v1230
      %v1265 = vmul.f32 %v1089, %v1230
      %v1266 = vmul.f32 %v1090, %v1235
      %v1267 = vmul.f32 %v1091, %v1235
      %v1268 = vmul.f32 %v1092, %v1240
      %v1269 = vmul.f32 %v1093, %v1240
      %v1270 = vmul.f32 %v1094, %v1245
      %v1271 = vmul.f32 %v1095, %v1245
      %v1272 = vmul.f32 %v1096, %v1250
      %v1273 = vmul.f32 %v1097, %v1250
      %v1274 = vmul.f32 %v1098, %v1255
      %v1275 = vmul.f32 %v1099, %v1255
      %v1276 = vmul.f32 %v1100, %v1260
      %v1277 = vmul.f32 %v1101, %v1260
      %1279 = vset.pattern.permute.xlu0 0
      %1280 = vperm.xlu0 %1279, %v1214
      %v1281 = vpop.permute.xlu0 %1280
      %1284 = vset.pattern.permute.xlu0 0
      %1285 = vperm.xlu0 %1284, %v1215
      %v1286 = vpop.permute.xlu0 %1285
      %1289 = vset.pattern.permute.xlu0 0
      %1290 = vperm.xlu0 %1289, %v1216
      %v1291 = vpop.permute.xlu0 %1290
      %1294 = vset.pattern.permute.xlu0 0
      %1295 = vperm.xlu0 %1294, %v1217
      %v1296 = vpop.permute.xlu0 %1295
      %1299 = vset.pattern.permute.xlu0 0
      %1300 = vperm.xlu0 %1299, %v1218
      %v1301 = vpop.permute.xlu0 %1300
      %1304 = vset.pattern.permute.xlu0 0
      %1305 = vperm.xlu0 %1304, %v1219
      %v1306 = vpop.permute.xlu0 %1305
      %1309 = vset.pattern.permute.xlu0 0
      %1310 = vperm.xlu0 %1309, %v1220
      %v1311 = vpop.permute.xlu0 %1310
      %1314 = vset.pattern.permute.xlu0 0
      %1315 = vperm.xlu0 %1314, %v1221
      %v1316 = vpop.permute.xlu0 %1315
      %v1318 = vadd.f32 %v1262, %v1281
      %v1319 = vadd.f32 %v1263, %v1281
      %v1320 = vadd.f32 %v1264, %v1286
      %v1321 = vadd.f32 %v1265, %v1286
      %v1322 = vadd.f32 %v1266, %v1291
      %v1323 = vadd.f32 %v1267, %v1291
      %v1324 = vadd.f32 %v1268, %v1296
      %v1325 = vadd.f32 %v1269, %v1296
      %v1326 = vadd.f32 %v1270, %v1301
      %v1327 = vadd.f32 %v1271, %v1301
      %v1328 = vadd.f32 %v1272, %v1306
      %v1329 = vadd.f32 %v1273, %v1306
      %v1330 = vadd.f32 %v1274, %v1311
      %v1331 = vadd.f32 %v1275, %v1311
      %v1332 = vadd.f32 %v1276, %v1316
      %v1333 = vadd.f32 %v1277, %v1316
      %1334 = vst [vmem:[%s319] sm:$0xff] %v1318
      %1335 = vst [vmem:[%s319 + $0x8] sm:$0xff] %v1319
      %1336 = vst [vmem:[%s319 + $0x10] sm:$0xff] %v1320
      %1337 = vst [vmem:[%s319 + $0x18] sm:$0xff] %v1321
      %1338 = vst [vmem:[%s319 + $0x20] sm:$0xff] %v1322
      %1339 = vst [vmem:[%s319 + $0x28] sm:$0xff] %v1323
      %1340 = vst [vmem:[%s319 + $0x30] sm:$0xff] %v1324
      %1341 = vst [vmem:[%s319 + $0x38] sm:$0xff] %v1325
      %1342 = vst [vmem:[%s319 + $0x40] sm:$0xff] %v1326
      %1343 = vst [vmem:[%s319 + $0x48] sm:$0xff] %v1327
      %1344 = vst [vmem:[%s319 + $0x50] sm:$0xff] %v1328
      %1345 = vst [vmem:[%s319 + $0x58] sm:$0xff] %v1329
      %1346 = vst [vmem:[%s319 + $0x60] sm:$0xff] %v1330
      %1347 = vst [vmem:[%s319 + $0x68] sm:$0xff] %v1331
      %1348 = vst [vmem:[%s319 + $0x70] sm:$0xff] %v1332
      %1349 = vst [vmem:[%s319 + $0x78] sm:$0xff] %v1333
      %p1350 = scmp.lt.s32.totalorder %s19, 1
      %s1351 = scalar_select %p1350, %s19, 1
      %s1352 = smul.addr %s1351, 16
      %s1353 = smul.addr %s1352, 8
      %s1354 = scalar_lea.vmem %s8, %s1353
      // Predicated region
      $region53: #{agent_controller_film.1} parent=51 // pred_check
        %p1355 = pneg %p215
      $region54: #{agent_controller_film.1} parent=51 // pred_check_branch
        %1357 = sbr.rel (%p1355) target = $region56
      $region55: #{agent_controller_film.1} parent=51 // pred_region
        _
      $region56: #{agent_controller_film.1} parent=51 // pred_fallthru
        _
    $region52: #{agent_controller_film.1} parent=5 // pred_fallthru
      _
    %p1358 = scmp.le.s32.totalorder 2, %s14
    // Predicated region
    $region57: #{agent_controller_film.1} parent=5 // pred_check
      %p1359 = pneg %p1358
    $region58: #{agent_controller_film.1} parent=5 // pred_check_branch
      %1361 = sbr.rel (%p1359) target = $region60
    $region59: #{agent_controller_film.1} parent=5 // pred_region
      %s1362 = ssub.s32 %s14, 2
      // Predicated region
      $region61: #{agent_controller_film.1} parent=59 // pred_check
        %p1363 = pneg %p221
      $region62: #{agent_controller_film.1} parent=59 // pred_check_branch
        %1365 = sbr.rel (%p1363) target = $region64
      $region63: #{agent_controller_film.1} parent=59 // pred_region
        %p1366 = scmp.lt.s32.totalorder %s20, 1
        %s1367 = scalar_select %p1366, %s20, 1
        %s1368 = smul.addr %s1367, 16
        %s1369 = smul.addr %s1368, 8
        %s1370 = scalar_lea.vmem %s8, %s1369
      $region64: #{agent_controller_film.1} parent=59 // pred_fallthru
        _
    $region60: #{agent_controller_film.1} parent=5 // pred_fallthru
      _
  $region6: #{agent_controller_film.1} parent=0 // loop_footer
    %s18 = sadd.s32 1, %s14
  $region7: #{agent_controller_film.1} parent=0 // loop_footer_branch
    %13 = sbr.rel target = $region3
  $region8: #{agent_controller_film.1} parent=0 // loop_exit
    _

</llo_original>
